<compile_context>
chip_gen: v7x
topology: tpu7x:2x2x1
jax: 0.10.0
libtpu: 0.0.40
codegen_flags: <defaults>
</compile_context>

<pallas_src>
import functools
import math

import jax
import jax.numpy as jnp
from jax.experimental import pallas as pl
from jax.experimental.pallas import tpu as pltpu

LANES = 128
SUBLANES = 8
_VMEM_TILE_BUDGET = 24 * 1024 * 1024   # per-step double-buffer budget (safe on v5e/v6e/v7x)
_VMEM_LIMIT_BYTES = 32 * 1024 * 1024   # explicit scoped-VMEM limit (<= v7x 64 MiB physical)


def _round_up(v, m):
    return ((v + m - 1) // m) * m


def gmm_kernel(x_ref, a_ref, b_ref, bias_ref, out_ref):
    """One batch tile:  out = x^2 @ A' + x @ B' + bias'.

    x_ref    : (tn, D) input tile (native dtype, cast to f32 in-kernel)
    a_ref    : (D, K)  f32   scale * inv_cov^T
    b_ref    : (D, K)  f32   scale * (-2 * mean * inv_cov)^T
    bias_ref : (1, K)  f32   scale * (D*log(2pi) + log|Sigma| + m^T Sigma^-1 m)
    out_ref  : (tn, K) f32   norm_w_k * log N(x | mean_k, diag(cov_k))
    """
    x = x_ref[...].astype(jnp.float32)
    acc = jnp.dot(x * x, a_ref[...], preferred_element_type=jnp.float32)
    acc = acc + jnp.dot(x, b_ref[...], preferred_element_type=jnp.float32)
    out_ref[...] = acc + bias_ref[...]


@functools.partial(jax.jit, static_argnames=("block_n",))
def gmm_forward(x, means, covs, weights, *, block_n=8192):
    """x: (N, D); means, covs: (K, D); weights: (K,) -> (N, K) float32."""
    N, D = x.shape
    K = means.shape[0]

    # ---- hoisted K x D constants (computed once in XLA, tiny) ---------------
    means = means.astype(jnp.float32)
    covs = covs.astype(jnp.float32)
    weights = weights.astype(jnp.float32)

    inv_cov = 1.0 / covs                                        # (K, D)
    logdet = jnp.sum(jnp.log(covs), axis=-1)                    # (K,)
    m_quad = jnp.sum(means * means * inv_cov, axis=-1)          # (K,)
    scale = -0.5 * jax.nn.softmax(weights, axis=0)              # (K,)

    # Fold the softmax scale directly into the matmul operands and bias (drops a
    # per-tile VPU multiply/broadcast and one input operand/DMA from the kernel).
    a = jnp.transpose(inv_cov) * scale[None, :]                 # (D, K)
    b = jnp.transpose(-2.0 * means * inv_cov) * scale[None, :]  # (D, K)
    bias = (scale * (D * math.log(2.0 * math.pi) + logdet + m_quad)).reshape(1, K)

    # ---- batch tile sizing ---------------------------------------------------
    # Big tiles amortize the ~0.35us/step pipeline overhead; bound them by a
    # conservative VMEM budget (x + out blocks, double buffered, lane-padded
    # physical layout), and keep at least 2 grid steps so v7x can shard the
    # parallel batch axis over both TensorCores.
    x_bytes = jnp.dtype(x.dtype).itemsize
    row_bytes = 2 * (_round_up(D, LANES) * x_bytes + _round_up(K, LANES) * 4)
    tn_vmem = max(SUBLANES, (_VMEM_TILE_BUDGET // row_bytes) // SUBLANES * SUBLANES)
    tn_split = _round_up(pl.cdiv(N, 2), SUBLANES)
    tn = _round_up(max(SUBLANES, min(block_n, tn_vmem, tn_split)), SUBLANES)
    grid = (pl.cdiv(N, tn),)

    return pl.pallas_call(
        gmm_kernel,
        out_shape=jax.ShapeDtypeStruct((N, K), jnp.float32),
        grid_spec=pltpu.PrefetchScalarGridSpec(
            num_scalar_prefetch=0,
            grid=grid,
            in_specs=[
                pl.BlockSpec((tn, D), lambda i: (i, 0)),    # x tile (streamed)
                pl.BlockSpec((D, K), lambda i: (0, 0)),     # A' (grid-invariant)
                pl.BlockSpec((D, K), lambda i: (0, 0)),     # B' (grid-invariant)
                pl.BlockSpec((1, K), lambda i: (0, 0)),     # bias' (grid-invariant)
            ],
            out_specs=pl.BlockSpec((tn, K), lambda i: (i, 0)),
        ),
        compiler_params=pltpu.CompilerParams(
            dimension_semantics=("parallel",),
            vmem_limit_bytes=_VMEM_LIMIT_BYTES,
        ),
        cost_estimate=pl.CostEstimate(
            flops=4 * N * D * K + 3 * N * K + N * D,
            transcendentals=0,
            bytes_accessed=N * D * x_bytes + N * K * 4 + 2 * D * K * 4 + K * 4,
        ),
    )(x, a, b, bias)


def gmm_reference(x, means, covs, weights):
    """Pure-JAX reference mirroring torch.distributions.MultivariateNormal."""
    norm_w = jax.nn.softmax(weights.astype(jnp.float32), axis=0)   # (K,)
    D = x.shape[-1]
    diff = x.astype(jnp.float32)[:, None, :] - means[None, :, :]   # (N, K, D)
    maha = jnp.sum(diff * diff / covs[None, :, :], axis=-1)        # (N, K)
    logdet = jnp.sum(jnp.log(covs), axis=-1)                       # (K,)
    logp = -0.5 * (D * math.log(2.0 * math.pi) + logdet[None, :] + maha)
    return norm_w[None, :] * logp                                  # (N, K)


if __name__ == "__main__":
    key = jax.random.PRNGKey(0)

    # Check 1: small shapes consistent with the module (batch=8, D=32, K=4).
    N, D, K = 8, 32, 4
    k1, k2, k3, k4 = jax.random.split(key, 4)
    x = jax.random.normal(k1, (N, D), dtype=jnp.float32)
    means = jax.random.normal(k2, (K, D), dtype=jnp.float32)
    covs = jax.random.uniform(k3, (K, D), dtype=jnp.float32, minval=0.5, maxval=1.5)
    weights = jax.random.normal(k4, (K,), dtype=jnp.float32)

    out = gmm_forward(x, means, covs, weights)
    jax.block_until_ready(out)
    ref = gmm_reference(x, means, covs, weights)
    assert out.shape == (N, K)
    assert jnp.allclose(out, ref, rtol=1e-4, atol=1e-4), "mismatch vs reference"

    # Check 2: multi-tile grid, N not a multiple of the tile (clipped tail block),
    # odd K (narrow masked store).
    N2, K2 = 520, 5
    k5, k6, k7, k8 = jax.random.split(jax.random.PRNGKey(1), 4)
    x2 = jax.random.normal(k5, (N2, D), dtype=jnp.float32)
    means2 = jax.random.normal(k6, (K2, D), dtype=jnp.float32)
    covs2 = jax.random.uniform(k7, (K2, D), dtype=jnp.float32, minval=0.5, maxval=1.5)
    weights2 = jax.random.normal(k8, (K2,), dtype=jnp.float32)

    out2 = gmm_forward(x2, means2, covs2, weights2, block_n=128)
    jax.block_until_ready(out2)
    ref2 = gmm_reference(x2, means2, covs2, weights2)
    assert out2.shape == (N2, K2)
    assert jnp.allclose(out2, ref2, rtol=1e-4, atol=1e-4), "mismatch vs reference (tiled)"

    # Check 3: bf16 input streamed without any wrapper up-cast (kernel casts).
    N3, K3 = 512, 6
    k9, k10, k11, k12 = jax.random.split(jax.random.PRNGKey(2), 4)
    x3 = jax.random.normal(k9, (N3, D), dtype=jnp.bfloat16)
    means3 = jax.random.normal(k10, (K3, D), dtype=jnp.float32)
    covs3 = jax.random.uniform(k11, (K3, D), dtype=jnp.float32, minval=0.5, maxval=1.5)
    weights3 = jax.random.normal(k12, (K3,), dtype=jnp.float32)

    out3 = gmm_forward(x3, means3, covs3, weights3)
    jax.block_until_ready(out3)
    ref3 = gmm_reference(x3, means3, covs3, weights3)
    assert out3.shape == (N3, K3)
    assert jnp.allclose(out3, ref3, rtol=2e-3, atol=2e-3), "mismatch vs reference (bf16)"

    print("KERNEL_OK")
</pallas_src>

<mosaic_0001>
module attributes {stable_mosaic.version = 11 : i64} {
  func.func @gmm_kernel(%arg0: i32, %arg1: memref<8x32xf32, #tpu.memory_space<vmem>>, %arg2: memref<32x4xf32, #tpu.memory_space<vmem>>, %arg3: memref<32x4xf32, #tpu.memory_space<vmem>>, %arg4: memref<1x4xf32, #tpu.memory_space<vmem>>, %arg5: memref<8x4xf32, #tpu.memory_space<vmem>>) attributes {dimension_semantics = [#tpu.dimension_semantics<parallel>], iteration_bounds = array<i64: 1>, scalar_prefetch = 0 : i64, scratch_operands = 0 : i64, tpu.core_type = #tpu.core_type<tc>, window_params = [{transform_indices = @transform_0, window_bounds = array<i64: 8, 32>}, {pipeline_mode = #tpu.pipeline_mode<synchronous>, transform_indices = @transform_1, window_bounds = array<i64: 32, 4>}, {pipeline_mode = #tpu.pipeline_mode<synchronous>, transform_indices = @transform_2, window_bounds = array<i64: 32, 4>}, {pipeline_mode = #tpu.pipeline_mode<synchronous>, transform_indices = @transform_3, window_bounds = array<i64: 1, 4>}, {transform_indices = @transform_4, window_bounds = array<i64: 8, 4>}]} {
    %c0 = arith.constant 0 : index
    %c0_0 = arith.constant 0 : index
    %0 = vector.load %arg1[%c0, %c0_0] : memref<8x32xf32, #tpu.memory_space<vmem>>, vector<8x32xf32>
    %1 = arith.mulf %0, %0 : vector<8x32xf32>
    %c0_1 = arith.constant 0 : index
    %c0_2 = arith.constant 0 : index
    %2 = vector.load %arg2[%c0_1, %c0_2] : memref<32x4xf32, #tpu.memory_space<vmem>>, vector<32x4xf32>
    %cst = arith.constant dense<0.000000e+00> : vector<8x4xf32>
    %3 = tpu.matmul %1, %2, %cst {dimension_numbers = #tpu.dot_dimension_numbers<[1], [0], [0], [1], [0, 0, 1, 1], [], []>} : vector<8x32xf32>, vector<32x4xf32>, vector<8x4xf32> -> vector<8x4xf32>
    %c0_3 = arith.constant 0 : index
    %c0_4 = arith.constant 0 : index
    %4 = vector.load %arg3[%c0_3, %c0_4] : memref<32x4xf32, #tpu.memory_space<vmem>>, vector<32x4xf32>
    %cst_5 = arith.constant dense<0.000000e+00> : vector<8x4xf32>
    %5 = tpu.matmul %0, %4, %cst_5 {dimension_numbers = #tpu.dot_dimension_numbers<[1], [0], [0], [1], [0, 0, 1, 1], [], []>} : vector<8x32xf32>, vector<32x4xf32>, vector<8x4xf32> -> vector<8x4xf32>
    %6 = arith.addf %3, %5 : vector<8x4xf32>
    %c0_6 = arith.constant 0 : index
    %c0_7 = arith.constant 0 : index
    %7 = vector.load %arg4[%c0_6, %c0_7] : memref<1x4xf32, #tpu.memory_space<vmem>>, vector<1x4xf32>
    %8 = vector.broadcast %7 : vector<1x4xf32> to vector<8x4xf32>
    %9 = arith.addf %6, %8 : vector<8x4xf32>
    %c0_8 = arith.constant 0 : index
    %c0_9 = arith.constant 0 : index
    %10 = vector.load %arg5[%c0_8, %c0_9] : memref<8x4xf32, #tpu.memory_space<vmem>>, vector<8x4xf32>
    tpu.vector_store %arg5[%c0_8, %c0_9], %9 {strides = array<i32>} : memref<8x4xf32, #tpu.memory_space<vmem>>, vector<8x4xf32>,
    return
  }
  func.func @transform_0(%arg0: i32) -> (i32, i32) {
    %c0_i32 = arith.constant 0 : i32
    %c0_i32_0 = arith.constant 0 : i32
    return %arg0, %c0_i32 : i32, i32
  }
  func.func @transform_1(%arg0: i32) -> (i32, i32) {
    %c0_i32 = arith.constant 0 : i32
    %c0_i32_0 = arith.constant 0 : i32
    %c0_i32_1 = arith.constant 0 : i32
    return %c0_i32, %c0_i32_0 : i32, i32
  }
  func.func @transform_2(%arg0: i32) -> (i32, i32) {
    %c0_i32 = arith.constant 0 : i32
    %c0_i32_0 = arith.constant 0 : i32
    %c0_i32_1 = arith.constant 0 : i32
    return %c0_i32, %c0_i32_0 : i32, i32
  }
  func.func @transform_3(%arg0: i32) -> (i32, i32) {
    %c0_i32 = arith.constant 0 : i32
    %c0_i32_0 = arith.constant 0 : i32
    %c0_i32_1 = arith.constant 0 : i32
    return %c0_i32, %c0_i32_0 : i32, i32
  }
  func.func @transform_4(%arg0: i32) -> (i32, i32) {
    %c0_i32 = arith.constant 0 : i32
    %c0_i32_0 = arith.constant 0 : i32
    return %arg0, %c0_i32 : i32, i32
  }
}

</mosaic_0001>

<llo_original>
// kernel: gmm_forward.1
$region0: #{gmm_forward.1}
  #allocation0 [shape = 'u32[]', space=smem, size = 0x4, offset = 0x4, fixed_abs, tag = 'smem constant byte address 0x4 - core index']
  #allocation1 [shape = 'u32[144,128]{1,0:T(1,128)}', space=vmem, size = 0x12000, scoped, tag = 'internal scratch']
  %s0 = inlined_call_operand.vmem [shape: f32[8,32], index: 0, kind: input, shape index: {}]
  %s1 = inlined_call_operand.vmem [shape: f32[32,4], index: 1, kind: input, shape index: {}]
  %s2 = inlined_call_operand.vmem [shape: f32[32,4], index: 2, kind: input, shape index: {}]
  %s3 = inlined_call_operand.vmem [shape: f32[1,4], index: 3, kind: input, shape index: {}]
  %s4 = inlined_call_operand.vmem [shape: f32[8,4], index: 4, kind: output, shape index: {}]
  %s5 = sld [smem:[#allocation0]]
  $region26: #{gmm_forward.1} parent=0
    _
  %s7 = ssub.s32 1, %s5
  %s8 = scalar_select 0, %s7, %s5
  // Predicated region
  $region2: #{gmm_forward.1} parent=0 // pred_check
    _
  $region3: #{gmm_forward.1} parent=0 // pred_check_branch
    %10 = sbr.rel (0) target = $region5
  $region4: #{gmm_forward.1} parent=0 // pred_region
    _
  $region5: #{gmm_forward.1} parent=0 // pred_fallthru
    _
  // Predicated region
  $region6: #{gmm_forward.1} parent=0 // pred_check
    _
  $region7: #{gmm_forward.1} parent=0 // pred_check_branch
    %12 = sbr.rel (0) target = $region9
  $region8: #{gmm_forward.1} parent=0 // pred_region
    _
  $region9: #{gmm_forward.1} parent=0 // pred_fallthru
    _
  // Predicated region
  $region10: #{gmm_forward.1} parent=0 // pred_check
    _
  $region11: #{gmm_forward.1} parent=0 // pred_check_branch
    %14 = sbr.rel (0) target = $region13
  $region12: #{gmm_forward.1} parent=0 // pred_region
    _
  $region13: #{gmm_forward.1} parent=0 // pred_fallthru
    _
  // Predicated region
  $region14: #{gmm_forward.1} parent=0 // pred_check
    _
  $region15: #{gmm_forward.1} parent=0 // pred_check_branch
    %16 = sbr.rel (0) target = $region17
  $region16: #{gmm_forward.1} parent=0 // pred_region
    _
  $region17: #{gmm_forward.1} parent=0 // pred_fallthru
    _
  %v17 = vld [vmem:[%s0] sm:$0xff]
  %v18 = vmul.f32 %v17, %v17
  %v19 = vld [vmem:[%s1] sm:$0xff]
  %v20 = vld [vmem:[%s1 + $0x8] sm:$0xff]
  %v21 = vld [vmem:[%s1 + $0x10] sm:$0xff]
  %v22 = vld [vmem:[%s1 + $0x18] sm:$0xff]
  %v23 = vld [vmem:[%s2] sm:$0xff]
  %v24 = vld [vmem:[%s2 + $0x8] sm:$0xff]
  %v25 = vld [vmem:[%s2 + $0x10] sm:$0xff]
  %v26 = vld [vmem:[%s2 + $0x18] sm:$0xff]
  %vm27 = vcmask 261120
  %v29 = vsel %vm27, %v17, 0
  %31 = vmatprep.subr.mxu0 0.0
  %32 = vmatpush1.msra.mxu0 %v23
  %33 = vmatprep.subr.mxu0 0.0
  %34 = vmatpush1.msra.mxu0 %v24
  %35 = vmatprep.subr.mxu0 0.0
  %36 = vmatpush1.msra.mxu0 %v25
  %37 = vmatprep.subr.mxu0 0.0
  %38 = vmatpush1.msra.mxu0 %v26
  %39 = vmatprep.subr.mxu0 0.0
  %40 = vmatpush1.msra.mxu0 0.0
  %41 = vmatprep.subr.mxu0 0.0
  %42 = vmatpush1.msra.mxu0 0.0
  %43 = vmatprep.subr.mxu0 0.0
  %44 = vmatpush1.msra.mxu0 0.0
  %45 = vmatprep.subr.mxu0 0.0
  %46 = vmatpush1.msra.mxu0 0.0
  %47 = vmatprep.subr.mxu0 0.0
  %48 = vmatpush1.msra.mxu0 0.0
  %49 = vmatprep.subr.mxu0 0.0
  %50 = vmatpush1.msra.mxu0 0.0
  %51 = vmatprep.subr.mxu0 0.0
  %52 = vmatpush1.msra.mxu0 0.0
  %53 = vmatprep.subr.mxu0 0.0
  %54 = vmatpush1.msra.mxu0 0.0
  %55 = vmatprep.subr.mxu0 0.0
  %56 = vmatpush1.msra.mxu0 0.0
  %57 = vmatprep.subr.mxu0 0.0
  %58 = vmatpush1.msra.mxu0 0.0
  %59 = vmatprep.subr.mxu0 0.0
  %60 = vmatpush1.msra.mxu0 0.0
  %61 = vmatprep.subr.mxu0 0.0
  %62 = vmatpush1.msra.mxu0 0.0
  %63 = vmatprep.subr.mxu0 0.0
  %64 = vmatpush1.msra.mxu0 0.0
  %65 = vmatprep.subr.mxu0 0.0
  %66 = vmatpush1.msra.mxu0 0.0
  %67 = vmatprep.subr.mxu0 0.0
  %68 = vmatpush1.msra.mxu0 0.0
  %69 = vmatprep.subr.mxu0 0.0
  %70 = vmatpush1.msra.mxu0 0.0
  %71 = vmatprep.subr.mxu0 0.0
  %72 = vmatpush1.msra.mxu0 0.0
  %73 = vmatprep.subr.mxu0 0.0
  %74 = vmatpush1.msra.mxu0 0.0
  %75 = vmatprep.subr.mxu0 0.0
  %76 = vmatpush1.msra.mxu0 0.0
  %77 = vmatprep.subr.mxu0 0.0
  %78 = vmatpush1.msra.mxu0 0.0
  %79 = vmatprep.subr.mxu0 0.0
  %80 = vmatpush1.msra.mxu0 0.0
  %81 = vmatprep.subr.mxu0 0.0
  %82 = vmatpush1.msra.mxu0 0.0
  %83 = vmatprep.subr.mxu0 0.0
  %84 = vmatpush1.msra.mxu0 0.0
  %85 = vmatprep.subr.mxu0 0.0
  %86 = vmatpush1.msra.mxu0 0.0
  %87 = vmatprep.subr.mxu0 0.0
  %88 = vmatpush1.msra.mxu0 0.0
  %89 = vmatprep.subr.mxu0 0.0
  %90 = vmatpush1.msra.mxu0 0.0
  %91 = vmatprep.subr.mxu0 0.0
  %92 = vmatpush1.msra.mxu0 0.0
  %93 = vmatprep.subr.mxu0 0.0
  %94 = vmatpush1.msra.mxu0 0.0
  %95 = vmatprep.mubr.f32.mxu0 0.0
  %96 = vmatmul.mubr.f32.gmra.mrb[0].mxu0 %v29
  %v97 = vpop.f32.mrb[0].mxu0
  %v98 = vadd.f32 0.0, %v97
  %v99 = vpop.f32.mrb[0].mxu0
  %100 = vdwg.mxu0
  %v102 = vsel %vm27, %v18, 0
  %104 = vmatprep.subr.mxu0 0.0
  %105 = vmatpush1.msra.mxu0 %v19
  %106 = vmatprep.subr.mxu0 0.0
  %107 = vmatpush1.msra.mxu0 %v20
  %108 = vmatprep.subr.mxu0 0.0
  %109 = vmatpush1.msra.mxu0 %v21
  %110 = vmatprep.subr.mxu0 0.0
  %111 = vmatpush1.msra.mxu0 %v22
  %112 = vmatprep.subr.mxu0 0.0
  %113 = vmatpush1.msra.mxu0 0.0
  %114 = vmatprep.subr.mxu0 0.0
  %115 = vmatpush1.msra.mxu0 0.0
  %116 = vmatprep.subr.mxu0 0.0
  %117 = vmatpush1.msra.mxu0 0.0
  %118 = vmatprep.subr.mxu0 0.0
  %119 = vmatpush1.msra.mxu0 0.0
  %120 = vmatprep.subr.mxu0 0.0
  %121 = vmatpush1.msra.mxu0 0.0
  %122 = vmatprep.subr.mxu0 0.0
  %123 = vmatpush1.msra.mxu0 0.0
  %124 = vmatprep.subr.mxu0 0.0
  %125 = vmatpush1.msra.mxu0 0.0
  %126 = vmatprep.subr.mxu0 0.0
  %127 = vmatpush1.msra.mxu0 0.0
  %128 = vmatprep.subr.mxu0 0.0
  %129 = vmatpush1.msra.mxu0 0.0
  %130 = vmatprep.subr.mxu0 0.0
  %131 = vmatpush1.msra.mxu0 0.0
  %132 = vmatprep.subr.mxu0 0.0
  %133 = vmatpush1.msra.mxu0 0.0
  %134 = vmatprep.subr.mxu0 0.0
  %135 = vmatpush1.msra.mxu0 0.0
  %136 = vmatprep.subr.mxu0 0.0
  %137 = vmatpush1.msra.mxu0 0.0
  %138 = vmatprep.subr.mxu0 0.0
  %139 = vmatpush1.msra.mxu0 0.0
  %140 = vmatprep.subr.mxu0 0.0
  %141 = vmatpush1.msra.mxu0 0.0
  %142 = vmatprep.subr.mxu0 0.0
  %143 = vmatpush1.msra.mxu0 0.0
  %144 = vmatprep.subr.mxu0 0.0
  %145 = vmatpush1.msra.mxu0 0.0
  %146 = vmatprep.subr.mxu0 0.0
  %147 = vmatpush1.msra.mxu0 0.0
  %148 = vmatprep.subr.mxu0 0.0
  %149 = vmatpush1.msra.mxu0 0.0
  %150 = vmatprep.subr.mxu0 0.0
  %151 = vmatpush1.msra.mxu0 0.0
  %152 = vmatprep.subr.mxu0 0.0
  %153 = vmatpush1.msra.mxu0 0.0
  %154 = vmatprep.subr.mxu0 0.0
  %155 = vmatpush1.msra.mxu0 0.0
  %156 = vmatprep.subr.mxu0 0.0
  %157 = vmatpush1.msra.mxu0 0.0
  %158 = vmatprep.subr.mxu0 0.0
  %159 = vmatpush1.msra.mxu0 0.0
  %160 = vmatprep.subr.mxu0 0.0
  %161 = vmatpush1.msra.mxu0 0.0
  %162 = vmatprep.subr.mxu0 0.0
  %163 = vmatpush1.msra.mxu0 0.0
  %164 = vmatprep.subr.mxu0 0.0
  %165 = vmatpush1.msra.mxu0 0.0
  %166 = vmatprep.subr.mxu0 0.0
  %167 = vmatpush1.msra.mxu0 0.0
  %168 = vmatprep.mubr.f32.mxu0 0.0
  %169 = vmatmul.mubr.f32.gmra.mrb[0].mxu0 %v102
  %v170 = vpop.f32.mrb[0].mxu0
  %v171 = vadd.f32 %v98, %v170
  %v172 = vpop.f32.mrb[0].mxu0
  %173 = vdwg.mxu0
  %v174 = vld [vmem:[%s3] sm:$0x1]
  %v176 = vlaneseq
  %v177 = vshrl.u32 %v176, 7
  %v178 = vsub.s32 0, %v177
  %v179 = vrot.slane %v174, %v178
  %v181 = vadd.f32 %v171, %v179
  %vm182 = vcmask 31744
  %183 = vst.msk [vmem:[%s4] sm:$0xff] %vm182, %v181
  // Predicated region
  $region18: #{gmm_forward.1} parent=0 // pred_check
    _
  $region19: #{gmm_forward.1} parent=0 // pred_check_branch
    %185 = sbr.rel (0) target = $region21
  $region20: #{gmm_forward.1} parent=0 // pred_region
    _
  $region21: #{gmm_forward.1} parent=0 // pred_fallthru
    _
  // Predicated region
  $region22: #{gmm_forward.1} parent=0 // pred_check
    _
  $region23: #{gmm_forward.1} parent=0 // pred_check_branch
    %187 = sbr.rel (0) target = $region25
  $region24: #{gmm_forward.1} parent=0 // pred_region
    _
  $region25: #{gmm_forward.1} parent=0 // pred_fallthru
    _

</llo_original>
